<compile_context>
chip_gen: v6e
topology: v6e:2x2x1
jax: 0.10.0
libtpu: 0.0.40
codegen_flags: <defaults>
</compile_context>

<pallas_src>
import math

import jax
import jax.numpy as jnp
from jax.experimental import pallas as pl
from jax.experimental.pallas import tpu as pltpu

_INV_SQRT_2PI = 1.0 / math.sqrt(2.0 * math.pi)


def _theta_rl_kernel(log_sigma_ref, eps_ref, out_ref):
    log_sigma = log_sigma_ref[...]
    eps = eps_ref[...]

    # Gaussian pdf evaluated at the reparameterized sample:
    #   action - mu = sigma * eps
    #   pdf = 1/(sigma*sqrt(2pi)) * exp(-eps^2/2)
    #       = INV_SQRT_2PI * exp(-log_sigma - 0.5*eps^2)     (single EUP exp)
    theta = _INV_SQRT_2PI * jnp.exp(-log_sigma - 0.5 * (eps * eps))

    # Softmax along the last (lane) dim; max-subtraction guards overflow when
    # log_sigma is very negative (1/sigma blows up).
    m = jnp.max(theta, axis=-1, keepdims=True)
    e = jnp.exp(theta - m)
    denom = jnp.sum(e, axis=-1, keepdims=True)
    out_ref[...] = e * pl.reciprocal(denom, approx=True)


def _choose_tb(B, D, *, target_block_bytes=4 * 1024 * 1024):
    """Largest row tile (divisor of B) giving ~target_block_bytes per buffer."""
    target_rows = max(8, target_block_bytes // (D * 4))
    upper = min(B, target_rows)
    # Keep >=2 grid steps when the batch is big enough (v7x has 2 TCs that
    # shard a "parallel" grid axis).
    if B >= 16:
        upper = min(upper, B // 2)
    upper = max(1, upper)
    for tb in range(upper, 0, -1):
        if B % tb == 0:
            return tb
    return B


def theta_rl_forward(posterior_mu, posterior_log_sigma, eps, *, tb=None):
    """posterior_mu, posterior_log_sigma, eps: f32[B, D].

    `posterior_mu` is mathematically dead (it cancels out of the pdf evaluated
    at the rsample), so it is accepted for interface parity but never DMA'd.
    """
    del posterior_mu  # cancels: (action - mu)^2 / sigma^2 == eps^2
    B, D = posterior_log_sigma.shape
    if tb is None:
        tb = _choose_tb(B, D)
    assert B % tb == 0, "batch must be divisible by the row tile"

    grid = (B // tb,)
    row_spec = pl.BlockSpec((tb, D), lambda i: (i, 0))

    # 2 input streams + 1 output, double buffered, plus headroom; raise the
    # scoped VMEM limit explicitly (v5e default is only 16 MiB) while staying
    # well under v7x's 64 MiB-per-TC physical VMEM.
    block_bytes = tb * D * 4
    vmem_limit = int(min(48 << 20, max(16 << 20, 8 * block_bytes)))

    return pl.pallas_call(
        _theta_rl_kernel,
        out_shape=jax.ShapeDtypeStruct((B, D), jnp.float32),
        grid_spec=pltpu.PrefetchScalarGridSpec(
            num_scalar_prefetch=0,
            grid=grid,
            in_specs=[row_spec, row_spec],
            out_specs=row_spec,
        ),
        compiler_params=pltpu.CompilerParams(
            dimension_semantics=("parallel",),
            vmem_limit_bytes=vmem_limit),
    )(posterior_log_sigma, eps)


def _theta_rl_reference(mu, log_sigma, eps):
    # Full (unsimplified) formula, mirroring the PyTorch module, to validate
    # the in-kernel algebraic simplification.
    sigma = jnp.exp(log_sigma)
    action = mu + sigma * eps
    theta = (1.0 / (sigma * math.sqrt(2.0 * math.pi))
             * jnp.exp(-1.0 * (action - mu) ** 2 / (2.0 * sigma ** 2)))
    return jax.nn.softmax(theta, axis=-1)


if __name__ == "__main__":
    key = jax.random.PRNGKey(0)
    k_mu, k_ls, k_eps = jax.random.split(key, 3)

    B, D = 8, 128  # small, tile-friendly shapes
    posterior_mu = jax.random.normal(k_mu, (B, D), dtype=jnp.float32)
    posterior_log_sigma = 0.5 * jax.random.normal(k_ls, (B, D), dtype=jnp.float32)
    # rsample() noise made explicit so the kernel is deterministic.
    eps = jax.random.normal(k_eps, (B, D), dtype=jnp.float32)

    out = theta_rl_forward(posterior_mu, posterior_log_sigma, eps)
    out = jax.block_until_ready(out)

    ref = _theta_rl_reference(posterior_mu, posterior_log_sigma, eps)
    assert out.shape == (B, D)
    # Tolerance loosened slightly: approx (EUP) reciprocal in the softmax
    # normalizer introduces ~1e-4..1e-3 relative error.
    assert jnp.allclose(out, ref, atol=1e-4, rtol=2e-3), "mismatch vs reference"

    print("KERNEL_OK")
</pallas_src>

<mosaic_0001>
module attributes {stable_mosaic.version = 11 : i64} {
  func.func @_theta_rl_kernel(%arg0: i32, %arg1: memref<8x128xf32, #tpu.memory_space<vmem>>, %arg2: memref<8x128xf32, #tpu.memory_space<vmem>>, %arg3: memref<8x128xf32, #tpu.memory_space<vmem>>) attributes {dimension_semantics = [#tpu.dimension_semantics<parallel>], iteration_bounds = array<i64: 1>, scalar_prefetch = 0 : i64, scratch_operands = 0 : i64, tpu.core_type = #tpu.core_type<tc>, window_params = [{transform_indices = @transform_0, window_bounds = array<i64: 8, 128>}, {transform_indices = @transform_1, window_bounds = array<i64: 8, 128>}, {transform_indices = @transform_2, window_bounds = array<i64: 8, 128>}]} {
    %c0 = arith.constant 0 : index
    %c0_0 = arith.constant 0 : index
    %0 = vector.load %arg1[%c0, %c0_0] : memref<8x128xf32, #tpu.memory_space<vmem>>, vector<8x128xf32>
    %c0_1 = arith.constant 0 : index
    %c0_2 = arith.constant 0 : index
    %1 = vector.load %arg2[%c0_1, %c0_2] : memref<8x128xf32, #tpu.memory_space<vmem>>, vector<8x128xf32>
    %cst = arith.constant 0.000000e+00 : f32
    %2 = vector.broadcast %cst : f32 to vector<8x128xf32>
    %3 = arith.subf %2, %0 : vector<8x128xf32>
    %4 = arith.mulf %1, %1 : vector<8x128xf32>
    %cst_3 = arith.constant 5.000000e-01 : f32
    %5 = vector.broadcast %cst_3 : f32 to vector<8x128xf32>
    %6 = arith.mulf %5, %4 : vector<8x128xf32>
    %7 = arith.subf %3, %6 : vector<8x128xf32>
    %8 = math.exp %7 : vector<8x128xf32>
    %cst_4 = arith.constant 0.398942292 : f32
    %9 = vector.broadcast %cst_4 : f32 to vector<8x128xf32>
    %10 = arith.mulf %9, %8 : vector<8x128xf32>
    %cst_5 = arith.constant dense<0xFF800000> : vector<8xf32>
    %11 = vector.multi_reduction <maximumf>, %10, %cst_5 [1] : vector<8x128xf32> to vector<8xf32>
    %12 = vector.shape_cast %11 : vector<8xf32> to vector<8x1xf32>
    %13 = vector.broadcast %12 : vector<8x1xf32> to vector<8x128xf32>
    %14 = arith.subf %10, %13 : vector<8x128xf32>
    %15 = math.exp %14 : vector<8x128xf32>
    %cst_6 = arith.constant dense<0.000000e+00> : vector<8xf32>
    %16 = vector.multi_reduction <add>, %15, %cst_6 [1] : vector<8x128xf32> to vector<8xf32>
    %17 = vector.shape_cast %16 : vector<8xf32> to vector<8x1xf32>
    %18 = tpu.reciprocal %17 {approx = true} : vector<8x1xf32> -> vector<8x1xf32>
    %19 = vector.broadcast %18 : vector<8x1xf32> to vector<8x128xf32>
    %20 = arith.mulf %15, %19 : vector<8x128xf32>
    %c0_7 = arith.constant 0 : index
    %c0_8 = arith.constant 0 : index
    %21 = vector.load %arg3[%c0_7, %c0_8] : memref<8x128xf32, #tpu.memory_space<vmem>>, vector<8x128xf32>
    tpu.vector_store %arg3[%c0_7, %c0_8], %20 {strides = array<i32>} : memref<8x128xf32, #tpu.memory_space<vmem>>, vector<8x128xf32>,
    return
  }
  func.func @transform_0(%arg0: i32) -> (i32, i32) {
    %c0_i32 = arith.constant 0 : i32
    %c0_i32_0 = arith.constant 0 : i32
    return %arg0, %c0_i32 : i32, i32
  }
  func.func @transform_1(%arg0: i32) -> (i32, i32) {
    %c0_i32 = arith.constant 0 : i32
    %c0_i32_0 = arith.constant 0 : i32
    return %arg0, %c0_i32 : i32, i32
  }
  func.func @transform_2(%arg0: i32) -> (i32, i32) {
    %c0_i32 = arith.constant 0 : i32
    %c0_i32_0 = arith.constant 0 : i32
    return %arg0, %c0_i32 : i32, i32
  }
}

</mosaic_0001>

<llo_original>
// kernel: tpu_custom_call.1
$region0: #{tpu_custom_call.1}
  #allocation0 [shape = 'u32[]', space=smem, size = 0x4, offset = 0x4, fixed_abs, tag = 'smem constant byte address 0x4 - core index']
  #allocation1 [shape = 'u32[144,128]{1,0:T(1,128)}', space=vmem, size = 0x12000, scoped, tag = 'internal scratch']
  %s0 = inlined_call_operand.hbm [shape: f32[8,128], index: 0, kind: input, shape index: {}]
  %s1 = inlined_call_operand.hbm [shape: f32[8,128], index: 1, kind: input, shape index: {}]
  %s2 = inlined_call_operand.hbm [shape: f32[8,128], index: 2, kind: output, shape index: {}]
  %s3 = sld [smem:[#allocation0]]
  $region26: #{tpu_custom_call.1} parent=0
    _
  %s5 = ssub.s32 1, %s3
  %s6 = scalar_select 0, %s5, %s3
  $region1: #{tpu_custom_call.1} parent=0
    #allocation2 [shape = 'u8[4096]{0}', space=vmem, size = 0x1000, scoped, tag = 'input window, operand 0, single buffered']
    #allocation3 [shape = 's32[1]{0}', space=sflag, size = 0x4, scoped, tag = 'scoped memory for tpu_custom_call.1']
    #allocation4 [shape = 's32[1]{0}', space=sflag, size = 0x4, scoped, tag = 'scoped memory for tpu_custom_call.1']
    #allocation5 [shape = 'u8[4096]{0}', space=vmem, size = 0x1000, scoped, tag = 'input window, operand 1, single buffered']
    #allocation6 [shape = 's32[1]{0}', space=sflag, size = 0x4, scoped, tag = 'scoped memory for tpu_custom_call.1']
    #allocation7 [shape = 'u8[4096]{0}', space=vmem, size = 0x1000, scoped, tag = 'output window, operand 0, single buffered']
    %7 = vsyncpa [#allocation3], 0
    %8 = vsyncpa [#allocation6], 0
    %9 = vsyncpa [#allocation4], 0
    // Predicated region
    $region2: #{tpu_custom_call.1} parent=1 // pred_check
      _
    $region3: #{tpu_custom_call.1} parent=1 // pred_check_branch
      %11 = sbr.rel (0) target = $region5
    $region4: #{tpu_custom_call.1} parent=1 // pred_region
      %s13 = ssub.s32 128, 128
      %14 = vsyncadd [#allocation3], %s13
      %s16 = sshll.u32 [#allocation2], 4
      %s17 = int_to_ptr.vmem [resolvable:$true] %s16
      %19 = dma.hbm_to_vmem [thread:$0]  %s0, 128, %s17, [#allocation3]
    $region5: #{tpu_custom_call.1} parent=1 // pred_fallthru
      _
    // Predicated region
    $region6: #{tpu_custom_call.1} parent=1 // pred_check
      _
    $region7: #{tpu_custom_call.1} parent=1 // pred_check_branch
      %21 = sbr.rel (0) target = $region9
    $region8: #{tpu_custom_call.1} parent=1 // pred_region
      %s23 = ssub.s32 128, 128
      %24 = vsyncadd [#allocation6], %s23
      %s26 = sshll.u32 [#allocation5], 4
      %s27 = int_to_ptr.vmem [resolvable:$true] %s26
      %29 = dma.hbm_to_vmem [thread:$0]  %s1, 128, %s27, [#allocation6]
    $region9: #{tpu_custom_call.1} parent=1 // pred_fallthru
      _
    // Predicated region
    $region10: #{tpu_custom_call.1} parent=1 // pred_check
      _
    $region11: #{tpu_custom_call.1} parent=1 // pred_check_branch
      %31 = sbr.rel (0) target = $region13
    $region12: #{tpu_custom_call.1} parent=1 // pred_region
      %32 = dma.done [#allocation3], 128
    $region13: #{tpu_custom_call.1} parent=1 // pred_fallthru
      _
    // Predicated region
    $region14: #{tpu_custom_call.1} parent=1 // pred_check
      _
    $region15: #{tpu_custom_call.1} parent=1 // pred_check_branch
      %34 = sbr.rel (0) target = $region17
    $region16: #{tpu_custom_call.1} parent=1 // pred_region
      %35 = dma.done [#allocation6], 128
    $region17: #{tpu_custom_call.1} parent=1 // pred_fallthru
      _
    %v36 = vld [vmem:[#allocation2] sm:$0xff]
    %v37 = vld [vmem:[#allocation5] sm:$0xff]
    %v38 = vsub.f32 0.0, %v36
    %v39 = vmul.f32 %v37, %v37
    %v40 = vmul.f32 %v39, 0.5
    %v41 = vsub.f32 %v38, %v40
    %v42 = vmul.f32 %v41, 1.442695
    %v43 = vpow.pop %v42
    %v44 = vmul.f32 %v43, 0.3989423
    %45 = vmax.xlane.f32.xlu0 %v44
    %v46 = vpop.xlane.xlu0 %45
    %v47 = vsub.f32 %v44, %v46
    %v48 = vmul.f32 %v47, 1.442695
    %v49 = vpow.pop %v48
    %50 = vadd.xlane.f32.xlu0 %v49
    %v51 = vpop.xlane.xlu0 %50
    %v52 = vrcp.pop %v51
    %v53 = vmul.f32 %v49, %v52
    %54 = vst [vmem:[#allocation7] sm:$0xff] %v53
    // Predicated region
    $region18: #{tpu_custom_call.1} parent=1 // pred_check
      _
    $region19: #{tpu_custom_call.1} parent=1 // pred_check_branch
      %56 = sbr.rel (0) target = $region21
    $region20: #{tpu_custom_call.1} parent=1 // pred_region
      %s58 = ssub.s32 128, 128
      %59 = vsyncadd [#allocation4], %s58
      %s61 = sshll.u32 [#allocation7], 4
      %s62 = int_to_ptr.vmem [resolvable:$true] %s61
      %64 = dma.vmem_to_hbm [thread:$0]  %s62, 128, %s2, [#allocation4]
    $region21: #{tpu_custom_call.1} parent=1 // pred_fallthru
      _
    // Predicated region
    $region22: #{tpu_custom_call.1} parent=1 // pred_check
      _
    $region23: #{tpu_custom_call.1} parent=1 // pred_check_branch
      %66 = sbr.rel (0) target = $region25
    $region24: #{tpu_custom_call.1} parent=1 // pred_region
      %67 = dma.done [#allocation4], 128
    $region25: #{tpu_custom_call.1} parent=1 // pred_fallthru
      _
    %68 = vsyncpa [#allocation3], 1
    %69 = vsyncpa [#allocation6], 1
    %70 = vsyncpa [#allocation4], 1

</llo_original>
